<compile_context>
chip_gen: v7x
topology: tpu7x:2x2x1
jax: 0.10.0
libtpu: 0.0.40
codegen_flags: <defaults>
</compile_context>

<pallas_src>
import math
import functools

import jax
import jax.numpy as jnp
import numpy as np
from jax.experimental import pallas as pl
from jax.experimental.pallas import tpu as pltpu


def _attention_kernel(q_ref, k_ref, v_ref, wq_ref, bq_ref, wk_ref, bk_ref,
                      wv_ref, bv_ref, o_ref, s_ref, *, num_heads, head_dim,
                      v_head_dim):
    B, Lq, Dq = q_ref.shape
    _, Lk, Dk = k_ref.shape
    Dv = v_ref.shape[2]
    H, hd, vhd = num_heads, head_dim, v_head_dim
    f32 = jnp.float32

    q2d = q_ref[...].reshape(B * Lq, Dq)
    k2d = k_ref[...].reshape(B * Lk, Dk)
    v2d = v_ref[...].reshape(B * Lk, Dv)

    # --- head-combined projections: one wide MXU matmul per projection.
    # Scale 1/sqrt(q_k_hidden_size) is already folded into wq/bq.
    q_all = jnp.dot(q2d, wq_ref[...], preferred_element_type=f32) + bq_ref[...]
    k_all = jnp.dot(k2d, wk_ref[...], preferred_element_type=f32) + bk_ref[...]
    v_all = jnp.dot(v2d, wv_ref[...], preferred_element_type=f32) + bv_ref[...]

    # --- per-head scores, written straight into the stacked (H*B, Lq, Lk)
    # scratch with leading-axis stores (no lane masking, no concatenate, no
    # long-lived Python list of score tensors). Head-major n = h*B + b, the
    # torch stacking order.
    for h in range(H):
        q_h = q_all[:, h * hd:(h + 1) * hd].reshape(B, Lq, hd)
        k_h = k_all[:, h * hd:(h + 1) * hd].reshape(B, Lk, hd)
        s_ref[h * B:(h + 1) * B] = jnp.einsum(
            'bqd,bkd->bqk', q_h, k_h, preferred_element_type=f32)

    # --- softmax over dim 0 of the (H*B, Lq, Lk) stack = jointly over heads
    # and batch, exactly as nn.functional.softmax(score, dim=0).
    s = s_ref[...]
    m = s.max(axis=0, keepdims=True)
    e = jnp.exp(s - m)
    inv = 1.0 / e.sum(axis=0, keepdims=True)   # exact: keeps rtol=1e-4
    p = e * inv
    # TODO(synk): dropout on p is a no-op at drop_rate=0.0; a nonzero rate
    # would use pltpu.prng_seed / pltpu.prng_random_bits here.

    # --- per-head PV, assembled into one (B, Lq, H*vhd) value followed by a
    # single lane-dense full-ref store (no per-head masked sub-128 stores).
    outs = []
    for h in range(H):
        v_h = v_all[:, h * vhd:(h + 1) * vhd].reshape(B, Lk, vhd)
        outs.append(jnp.einsum('bqk,bkd->bqd', p[h * B:(h + 1) * B], v_h,
                               preferred_element_type=f32))
    o_ref[...] = jnp.concatenate(outs, axis=-1).astype(o_ref.dtype)


def prepare_params(params, *, q_k_hidden_size):
    """One-time parameter prep: fold the scaled_dot scale into the Q
    projection weight and bias. Weights stay head-combined ([in, H*head_dim])
    so the kernel can do one wide matmul per projection."""
    scale = 1.0 / math.sqrt(q_k_hidden_size)
    return {
        'w_q': params['wq'] * scale, 'b_q': params['bq'] * scale,
        'w_k': params['wk'], 'b_k': params['bk'],
        'w_v': params['wv'], 'b_v': params['bv'],
    }


def basic_attention(q_embd, k_embd, v_embd, prep, *, num_heads):
    """Pallas wrapper. Whole problem fits in VMEM at these sizes, so the
    kernel runs once with full-array VMEM blocks (no grid); the roofline here
    is launch/DMA latency. See module-level TODOs for the production grid."""
    B, Lq, _ = q_embd.shape
    Lk = k_embd.shape[1]
    Hhd = prep['w_q'].shape[1]
    Do = prep['w_v'].shape[1]
    hd, vhd = Hhd // num_heads, Do // num_heads

    kernel = functools.partial(_attention_kernel, num_heads=num_heads,
                               head_dim=hd, v_head_dim=vhd)
    vmem = pl.BlockSpec(memory_space=pltpu.MemorySpace.VMEM)
    return pl.pallas_call(
        kernel,
        out_shape=jax.ShapeDtypeStruct((B, Lq, Do), jnp.float32),
        in_specs=[vmem] * 9,
        out_specs=vmem,
        scratch_shapes=[pltpu.VMEM((num_heads * B, Lq, Lk), jnp.float32)],
    )(q_embd, k_embd, v_embd,
      prep['w_q'], prep['b_q'], prep['w_k'], prep['b_k'],
      prep['w_v'], prep['b_v'])


def reference(q_embd, k_embd, v_embd, params, *, num_heads, q_k_hidden_size):
    """Pure-JAX transcription of BasicAttention.forward for verification."""
    B, Lq, _ = q_embd.shape
    Lk = k_embd.shape[1]
    Hhd = params['wq'].shape[1]
    Do = params['wv'].shape[1]
    hd, vhd = Hhd // num_heads, Do // num_heads
    q = q_embd @ params['wq'] + params['bq'][0]
    k = k_embd @ params['wk'] + params['bk'][0]
    v = v_embd @ params['wv'] + params['bv'][0]
    q = q.reshape(B, Lq, num_heads, hd).transpose(2, 0, 1, 3).reshape(-1, Lq, hd)
    k = k.reshape(B, Lk, num_heads, hd).transpose(2, 0, 1, 3).reshape(-1, Lk, hd)
    v = v.reshape(B, Lk, num_heads, vhd).transpose(2, 0, 1, 3).reshape(-1, Lk, vhd)
    score = jnp.einsum('nqd,nkd->nqk', q, k) / math.sqrt(q_k_hidden_size)
    score = jax.nn.softmax(score, axis=0)          # dim=0 softmax, as in torch
    out = jnp.einsum('nqk,nkd->nqd', score, v)
    heads = jnp.split(out, num_heads, axis=0)
    return jnp.concatenate(heads, axis=-1)


if __name__ == "__main__":
    # Module hyperparameters (default score_func='scaled_dot', bias=True).
    B, Lq, Lk = 2, 8, 8
    q_embd_size, k_embd_size, v_embd_size = 32, 24, 40
    q_k_hidden_size, output_hidden_size, num_heads = 32, 48, 2

    key = jax.random.PRNGKey(0)
    ks = jax.random.split(key, 9)
    q_embd = jax.random.normal(ks[0], (B, Lq, q_embd_size), jnp.float32)
    k_embd = jax.random.normal(ks[1], (B, Lk, k_embd_size), jnp.float32)
    v_embd = jax.random.normal(ks[2], (B, Lk, v_embd_size), jnp.float32)

    # Deterministic synthetic Linear parameters; stored as [in, out] / [1, out]
    # (i.e. torch nn.Linear weight transposed).
    params = {
        'wq': 0.1 * jax.random.normal(ks[3], (q_embd_size, q_k_hidden_size), jnp.float32),
        'bq': 0.1 * jax.random.normal(ks[4], (1, q_k_hidden_size), jnp.float32),
        'wk': 0.1 * jax.random.normal(ks[5], (k_embd_size, q_k_hidden_size), jnp.float32),
        'bk': 0.1 * jax.random.normal(ks[6], (1, q_k_hidden_size), jnp.float32),
        'wv': 0.1 * jax.random.normal(ks[7], (v_embd_size, output_hidden_size), jnp.float32),
        'bv': 0.1 * jax.random.normal(ks[8], (1, output_hidden_size), jnp.float32),
    }

    prep = prepare_params(params, q_k_hidden_size=q_k_hidden_size)
    prep = jax.tree_util.tree_map(
        lambda x: jax.block_until_ready(x) if isinstance(x, jax.Array) else x, prep)

    out = basic_attention(q_embd, k_embd, v_embd, prep, num_heads=num_heads)
    out = jax.block_until_ready(out)

    ref = reference(q_embd, k_embd, v_embd, params,
                    num_heads=num_heads, q_k_hidden_size=q_k_hidden_size)
    np.testing.assert_allclose(np.asarray(out), np.asarray(ref),
                               rtol=1e-4, atol=1e-4)
    assert out.shape == (B, Lq, output_hidden_size)
    print("KERNEL_OK")
</pallas_src>

<mosaic_0001>
module attributes {stable_mosaic.version = 11 : i64} {
  func.func @_attention_kernel(%arg0: memref<2x8x32xf32, #tpu.memory_space<vmem>>, %arg1: memref<2x8x24xf32, #tpu.memory_space<vmem>>, %arg2: memref<2x8x40xf32, #tpu.memory_space<vmem>>, %arg3: memref<32x32xf32, #tpu.memory_space<vmem>>, %arg4: memref<1x32xf32, #tpu.memory_space<vmem>>, %arg5: memref<24x32xf32, #tpu.memory_space<vmem>>, %arg6: memref<1x32xf32, #tpu.memory_space<vmem>>, %arg7: memref<40x48xf32, #tpu.memory_space<vmem>>, %arg8: memref<1x48xf32, #tpu.memory_space<vmem>>, %arg9: memref<2x8x48xf32, #tpu.memory_space<vmem>>, %arg10: memref<4x8x8xf32, #tpu.memory_space<vmem>>) attributes {dimension_semantics = [], scalar_prefetch = 0 : i64, scratch_operands = 1 : i64, tpu.core_type = #tpu.core_type<tc>} {
    %c0 = arith.constant 0 : index
    %c0_0 = arith.constant 0 : index
    %c0_1 = arith.constant 0 : index
    %0 = vector.load %arg0[%c0, %c0_0, %c0_1] : memref<2x8x32xf32, #tpu.memory_space<vmem>>, vector<2x8x32xf32>
    %1 = vector.shape_cast %0 : vector<2x8x32xf32> to vector<16x32xf32>
    %c0_2 = arith.constant 0 : index
    %c0_3 = arith.constant 0 : index
    %c0_4 = arith.constant 0 : index
    %2 = vector.load %arg1[%c0_2, %c0_3, %c0_4] : memref<2x8x24xf32, #tpu.memory_space<vmem>>, vector<2x8x24xf32>
    %3 = vector.shape_cast %2 : vector<2x8x24xf32> to vector<16x24xf32>
    %c0_5 = arith.constant 0 : index
    %c0_6 = arith.constant 0 : index
    %c0_7 = arith.constant 0 : index
    %4 = vector.load %arg2[%c0_5, %c0_6, %c0_7] : memref<2x8x40xf32, #tpu.memory_space<vmem>>, vector<2x8x40xf32>
    %5 = vector.shape_cast %4 : vector<2x8x40xf32> to vector<16x40xf32>
    %c0_8 = arith.constant 0 : index
    %c0_9 = arith.constant 0 : index
    %6 = vector.load %arg3[%c0_8, %c0_9] : memref<32x32xf32, #tpu.memory_space<vmem>>, vector<32x32xf32>
    %cst = arith.constant dense<0.000000e+00> : vector<16x32xf32>
    %7 = tpu.matmul %1, %6, %cst {dimension_numbers = #tpu.dot_dimension_numbers<[1], [0], [0], [1], [0, 0, 1, 1], [], []>} : vector<16x32xf32>, vector<32x32xf32>, vector<16x32xf32> -> vector<16x32xf32>
    %c0_10 = arith.constant 0 : index
    %c0_11 = arith.constant 0 : index
    %8 = vector.load %arg4[%c0_10, %c0_11] : memref<1x32xf32, #tpu.memory_space<vmem>>, vector<1x32xf32>
    %9 = vector.broadcast %8 : vector<1x32xf32> to vector<16x32xf32>
    %10 = arith.addf %7, %9 : vector<16x32xf32>
    %c0_12 = arith.constant 0 : index
    %c0_13 = arith.constant 0 : index
    %11 = vector.load %arg5[%c0_12, %c0_13] : memref<24x32xf32, #tpu.memory_space<vmem>>, vector<24x32xf32>
    %cst_14 = arith.constant dense<0.000000e+00> : vector<16x32xf32>
    %12 = tpu.matmul %3, %11, %cst_14 {dimension_numbers = #tpu.dot_dimension_numbers<[1], [0], [0], [1], [0, 0, 1, 1], [], []>} : vector<16x24xf32>, vector<24x32xf32>, vector<16x32xf32> -> vector<16x32xf32>
    %c0_15 = arith.constant 0 : index
    %c0_16 = arith.constant 0 : index
    %13 = vector.load %arg6[%c0_15, %c0_16] : memref<1x32xf32, #tpu.memory_space<vmem>>, vector<1x32xf32>
    %14 = vector.broadcast %13 : vector<1x32xf32> to vector<16x32xf32>
    %15 = arith.addf %12, %14 : vector<16x32xf32>
    %c0_17 = arith.constant 0 : index
    %c0_18 = arith.constant 0 : index
    %16 = vector.load %arg7[%c0_17, %c0_18] : memref<40x48xf32, #tpu.memory_space<vmem>>, vector<40x48xf32>
    %cst_19 = arith.constant dense<0.000000e+00> : vector<16x48xf32>
    %17 = tpu.matmul %5, %16, %cst_19 {dimension_numbers = #tpu.dot_dimension_numbers<[1], [0], [0], [1], [0, 0, 1, 1], [], []>} : vector<16x40xf32>, vector<40x48xf32>, vector<16x48xf32> -> vector<16x48xf32>
    %c0_20 = arith.constant 0 : index
    %c0_21 = arith.constant 0 : index
    %18 = vector.load %arg8[%c0_20, %c0_21] : memref<1x48xf32, #tpu.memory_space<vmem>>, vector<1x48xf32>
    %19 = vector.broadcast %18 : vector<1x48xf32> to vector<16x48xf32>
    %20 = arith.addf %17, %19 : vector<16x48xf32>
    %21 = vector.extract_strided_slice %10 {offsets = [0, 0], sizes = [16, 16], strides = [1, 1]} : vector<16x32xf32> to vector<16x16xf32>
    %22 = vector.shape_cast %21 : vector<16x16xf32> to vector<2x8x16xf32>
    %23 = vector.extract_strided_slice %15 {offsets = [0, 0], sizes = [16, 16], strides = [1, 1]} : vector<16x32xf32> to vector<16x16xf32>
    %24 = vector.shape_cast %23 : vector<16x16xf32> to vector<2x8x16xf32>
    "tpu.trace_start"() <{level = 10 : i32, message = "bqd,bkd->bqk"}> : () -> ()
    %cst_22 = arith.constant dense<0.000000e+00> : vector<2x8x8xf32>
    %25 = tpu.matmul %22, %24, %cst_22 {dimension_numbers = #tpu.dot_dimension_numbers<[2], [2], [1], [1], [0, 0, 0, 1, 1, 1], [0], [0]>} : vector<2x8x16xf32>, vector<2x8x16xf32>, vector<2x8x8xf32> -> vector<2x8x8xf32>
    "tpu.trace_stop"() : () -> ()
    %c0_23 = arith.constant 0 : index
    %c0_24 = arith.constant 0 : index
    %c0_25 = arith.constant 0 : index
    %26 = vector.load %arg10[%c0_23, %c0_24, %c0_25] : memref<4x8x8xf32, #tpu.memory_space<vmem>>, vector<2x8x8xf32>
    tpu.vector_store %arg10[%c0_23, %c0_24, %c0_25], %25 {strides = array<i32>} : memref<4x8x8xf32, #tpu.memory_space<vmem>>, vector<2x8x8xf32>,
    %27 = vector.extract_strided_slice %10 {offsets = [0, 16], sizes = [16, 16], strides = [1, 1]} : vector<16x32xf32> to vector<16x16xf32>
    %28 = vector.shape_cast %27 : vector<16x16xf32> to vector<2x8x16xf32>
    %29 = vector.extract_strided_slice %15 {offsets = [0, 16], sizes = [16, 16], strides = [1, 1]} : vector<16x32xf32> to vector<16x16xf32>
    %30 = vector.shape_cast %29 : vector<16x16xf32> to vector<2x8x16xf32>
    "tpu.trace_start"() <{level = 10 : i32, message = "bqd,bkd->bqk"}> : () -> ()
    %cst_26 = arith.constant dense<0.000000e+00> : vector<2x8x8xf32>
    %31 = tpu.matmul %28, %30, %cst_26 {dimension_numbers = #tpu.dot_dimension_numbers<[2], [2], [1], [1], [0, 0, 0, 1, 1, 1], [0], [0]>} : vector<2x8x16xf32>, vector<2x8x16xf32>, vector<2x8x8xf32> -> vector<2x8x8xf32>
    "tpu.trace_stop"() : () -> ()
    %c2 = arith.constant 2 : index
    %c0_27 = arith.constant 0 : index
    %c0_28 = arith.constant 0 : index
    %32 = vector.load %arg10[%c2, %c0_27, %c0_28] : memref<4x8x8xf32, #tpu.memory_space<vmem>>, vector<2x8x8xf32>
    tpu.vector_store %arg10[%c2, %c0_27, %c0_28], %31 {strides = array<i32>} : memref<4x8x8xf32, #tpu.memory_space<vmem>>, vector<2x8x8xf32>,
    %c0_29 = arith.constant 0 : index
    %c0_30 = arith.constant 0 : index
    %c0_31 = arith.constant 0 : index
    %33 = vector.load %arg10[%c0_29, %c0_30, %c0_31] : memref<4x8x8xf32, #tpu.memory_space<vmem>>, vector<4x8x8xf32>
    %cst_32 = arith.constant dense<0xFF800000> : vector<8x8xf32>
    %34 = vector.multi_reduction <maximumf>, %33, %cst_32 [0] : vector<4x8x8xf32> to vector<8x8xf32>
    %35 = vector.shape_cast %34 : vector<8x8xf32> to vector<1x8x8xf32>
    %36 = vector.broadcast %35 : vector<1x8x8xf32> to vector<4x8x8xf32>
    %37 = arith.subf %33, %36 : vector<4x8x8xf32>
    %38 = math.exp %37 : vector<4x8x8xf32>
    %cst_33 = arith.constant dense<0.000000e+00> : vector<8x8xf32>
    %39 = vector.multi_reduction <add>, %38, %cst_33 [0] : vector<4x8x8xf32> to vector<8x8xf32>
    %40 = vector.shape_cast %39 : vector<8x8xf32> to vector<1x8x8xf32>
    %cst_34 = arith.constant 1.000000e+00 : f32
    %41 = vector.broadcast %cst_34 : f32 to vector<1x8x8xf32>
    %42 = arith.divf %41, %40 : vector<1x8x8xf32>
    %43 = vector.broadcast %42 : vector<1x8x8xf32> to vector<4x8x8xf32>
    %44 = arith.mulf %38, %43 : vector<4x8x8xf32>
    %45 = vector.extract_strided_slice %20 {offsets = [0, 0], sizes = [16, 24], strides = [1, 1]} : vector<16x48xf32> to vector<16x24xf32>
    %46 = vector.shape_cast %45 : vector<16x24xf32> to vector<2x8x24xf32>
    %47 = vector.extract_strided_slice %44 {offsets = [0, 0, 0], sizes = [2, 8, 8], strides = [1, 1, 1]} : vector<4x8x8xf32> to vector<2x8x8xf32>
    "tpu.trace_start"() <{level = 10 : i32, message = "bqk,bkd->bqd"}> : () -> ()
    %cst_35 = arith.constant dense<0.000000e+00> : vector<2x8x24xf32>
    %48 = tpu.matmul %47, %46, %cst_35 {dimension_numbers = #tpu.dot_dimension_numbers<[2], [1], [1], [2], [0, 0, 0, 1, 1, 2], [0], [0]>} : vector<2x8x8xf32>, vector<2x8x24xf32>, vector<2x8x24xf32> -> vector<2x8x24xf32>
    "tpu.trace_stop"() : () -> ()
    %49 = vector.extract_strided_slice %20 {offsets = [0, 24], sizes = [16, 24], strides = [1, 1]} : vector<16x48xf32> to vector<16x24xf32>
    %50 = vector.shape_cast %49 : vector<16x24xf32> to vector<2x8x24xf32>
    %51 = vector.extract_strided_slice %44 {offsets = [2, 0, 0], sizes = [2, 8, 8], strides = [1, 1, 1]} : vector<4x8x8xf32> to vector<2x8x8xf32>
    "tpu.trace_start"() <{level = 10 : i32, message = "bqk,bkd->bqd"}> : () -> ()
    %cst_36 = arith.constant dense<0.000000e+00> : vector<2x8x24xf32>
    %52 = tpu.matmul %51, %50, %cst_36 {dimension_numbers = #tpu.dot_dimension_numbers<[2], [1], [1], [2], [0, 0, 0, 1, 1, 2], [0], [0]>} : vector<2x8x8xf32>, vector<2x8x24xf32>, vector<2x8x24xf32> -> vector<2x8x24xf32>
    "tpu.trace_stop"() : () -> ()
    %53 = tpu.concatenate %48, %52 in 2 : vector<2x8x24xf32>, vector<2x8x24xf32> -> vector<2x8x48xf32>
    %c0_37 = arith.constant 0 : index
    %c0_38 = arith.constant 0 : index
    %c0_39 = arith.constant 0 : index
    %54 = vector.load %arg9[%c0_37, %c0_38, %c0_39] : memref<2x8x48xf32, #tpu.memory_space<vmem>>, vector<2x8x48xf32>
    tpu.vector_store %arg9[%c0_37, %c0_38, %c0_39], %53 {strides = array<i32>} : memref<2x8x48xf32, #tpu.memory_space<vmem>>, vector<2x8x48xf32>,
    return
  }
}

</mosaic_0001>

<llo_original>
// kernel: tpu_custom_call.1
$region0: #{tpu_custom_call.1}
  #allocation0 [shape = 'u32[]', space=smem, size = 0x4, offset = 0x4, fixed_abs, tag = 'smem constant byte address 0x4 - core index']
  #allocation1 [shape = 'u32[144,128]{1,0:T(1,128)}', space=vmem, size = 0x12000, scoped, tag = 'internal scratch']
  #allocation2 [shape = 'f32[4,8,8]{2,1,0:T(8,128)}', space=vmem, size = 0x4000, scoped, tag = 'scratch operand']
  %s0 = inlined_call_operand.hbm [shape: f32[2,8,32], index: 0, kind: input, shape index: {}]
  %s1 = inlined_call_operand.hbm [shape: f32[2,8,24], index: 1, kind: input, shape index: {}]
  %s2 = inlined_call_operand.hbm [shape: f32[2,8,40], index: 2, kind: input, shape index: {}]
  %s3 = inlined_call_operand.hbm [shape: f32[32,32], index: 3, kind: input, shape index: {}]
  %s4 = inlined_call_operand.vmem [shape: f32[1,32], index: 4, kind: input, shape index: {}]
  %s5 = inlined_call_operand.hbm [shape: f32[24,32], index: 5, kind: input, shape index: {}]
  %s6 = inlined_call_operand.vmem [shape: f32[1,32], index: 6, kind: input, shape index: {}]
  %s7 = inlined_call_operand.hbm [shape: f32[40,48], index: 7, kind: input, shape index: {}]
  %s8 = inlined_call_operand.vmem [shape: f32[1,48], index: 8, kind: input, shape index: {}]
  %s9 = inlined_call_operand.hbm [shape: f32[2,8,48], index: 9, kind: output, shape index: {}]
  %s10 = sld [smem:[#allocation0]]
  $region70: #{tpu_custom_call.1} parent=0
    _
  %s12 = ssub.s32 1, %s10
  %s13 = scalar_select 0, %s12, %s10
  $region1: #{tpu_custom_call.1} parent=0
    #allocation3 [shape = 'u8[8192]{0}', space=vmem, size = 0x2000, scoped, tag = 'input window, operand 0, single buffered']
    #allocation4 [shape = 's32[1]{0}', space=sflag, size = 0x4, scoped, tag = 'scoped memory for tpu_custom_call.1']
    #allocation5 [shape = 's32[1]{0}', space=sflag, size = 0x4, scoped, tag = 'scoped memory for tpu_custom_call.1']
    #allocation6 [shape = 'u8[8192]{0}', space=vmem, size = 0x2000, scoped, tag = 'input window, operand 1, single buffered']
    #allocation7 [shape = 's32[1]{0}', space=sflag, size = 0x4, scoped, tag = 'scoped memory for tpu_custom_call.1']
    #allocation8 [shape = 'u8[8192]{0}', space=vmem, size = 0x2000, scoped, tag = 'input window, operand 2, single buffered']
    #allocation9 [shape = 'u8[16384]{0}', space=vmem, size = 0x4000, scoped, tag = 'input window, operand 3, single buffered']
    #allocation10 [shape = 's32[1]{0}', space=sflag, size = 0x4, scoped, tag = 'scoped memory for tpu_custom_call.1']
    #allocation11 [shape = 'u8[12288]{0}', space=vmem, size = 0x3000, scoped, tag = 'input window, operand 5, single buffered']
    #allocation12 [shape = 'u8[20480]{0}', space=vmem, size = 0x5000, scoped, tag = 'input window, operand 7, single buffered']
    #allocation13 [shape = 's32[1]{0}', space=sflag, size = 0x4, scoped, tag = 'scoped memory for tpu_custom_call.1']
    #allocation14 [shape = 'u8[8192]{0}', space=vmem, size = 0x2000, scoped, tag = 'output window, operand 0, single buffered']
    %14 = vsyncpa [#allocation4], 0
    %15 = vsyncpa [#allocation7], 0
    %16 = vsyncpa [#allocation10], 0
    %17 = vsyncpa [#allocation13], 0
    %18 = vsyncpa [#allocation5], 0
    // Predicated region
    $region2: #{tpu_custom_call.1} parent=1 // pred_check
      _
    $region3: #{tpu_custom_call.1} parent=1 // pred_check_branch
      %20 = sbr.rel (0) target = $region5
    $region4: #{tpu_custom_call.1} parent=1 // pred_region
      %s22 = ssub.s32 256, 256
      %23 = vsyncadd [#allocation4], %s22
      %s24 = sshll.u32 [#allocation3], 4
      %s25 = int_to_ptr.vmem [resolvable:$true] %s24
      %30 = dma.hbm_to_vmem [thread:$0]  %s0, 256, %s25, [#allocation4], 128, 128, 8
    $region5: #{tpu_custom_call.1} parent=1 // pred_fallthru
      _
    // Predicated region
    $region6: #{tpu_custom_call.1} parent=1 // pred_check
      _
    $region7: #{tpu_custom_call.1} parent=1 // pred_check_branch
      %32 = sbr.rel (0) target = $region9
    $region8: #{tpu_custom_call.1} parent=1 // pred_region
      %s34 = ssub.s32 256, 256
      %35 = vsyncadd [#allocation7], %s34
      %s36 = sshll.u32 [#allocation6], 4
      %s37 = int_to_ptr.vmem [resolvable:$true] %s36
      %42 = dma.hbm_to_vmem [thread:$0]  %s1, 256, %s37, [#allocation7], 128, 128, 8
    $region9: #{tpu_custom_call.1} parent=1 // pred_fallthru
      _
    // Predicated region
    $region10: #{tpu_custom_call.1} parent=1 // pred_check
      _
    $region11: #{tpu_custom_call.1} parent=1 // pred_check_branch
      %44 = sbr.rel (0) target = $region13
    $region12: #{tpu_custom_call.1} parent=1 // pred_region
      %s46 = ssub.s32 256, 256
      %47 = vsyncadd [#allocation7], %s46
      %s48 = sshll.u32 [#allocation8], 4
      %s49 = int_to_ptr.vmem [resolvable:$true] %s48
      %54 = dma.hbm_to_vmem [thread:$0]  %s2, 256, %s49, [#allocation7], 128, 128, 8
    $region13: #{tpu_custom_call.1} parent=1 // pred_fallthru
      _
    // Predicated region
    $region14: #{tpu_custom_call.1} parent=1 // pred_check
      _
    $region15: #{tpu_custom_call.1} parent=1 // pred_check_branch
      %56 = sbr.rel (0) target = $region17
    $region16: #{tpu_custom_call.1} parent=1 // pred_region
      %s58 = ssub.s32 512, 512
      %59 = vsyncadd [#allocation10], %s58
      %s60 = sshll.u32 [#allocation9], 4
      %s61 = int_to_ptr.vmem [resolvable:$true] %s60
      %66 = dma.hbm_to_vmem [thread:$0]  %s3, 512, %s61, [#allocation10], 128, 128, 8
    $region17: #{tpu_custom_call.1} parent=1 // pred_fallthru
      _
    // Predicated region
    $region18: #{tpu_custom_call.1} parent=1 // pred_check
      _
    $region19: #{tpu_custom_call.1} parent=1 // pred_check_branch
      %68 = sbr.rel (0) target = $region21
    $region20: #{tpu_custom_call.1} parent=1 // pred_region
      _
    $region21: #{tpu_custom_call.1} parent=1 // pred_fallthru
      _
    // Predicated region
    $region22: #{tpu_custom_call.1} parent=1 // pred_check
      _
    $region23: #{tpu_custom_call.1} parent=1 // pred_check_branch
      %70 = sbr.rel (0) target = $region25
    $region24: #{tpu_custom_call.1} parent=1 // pred_region
      %s72 = ssub.s32 384, 384
      %73 = vsyncadd [#allocation10], %s72
      %s74 = sshll.u32 [#allocation11], 4
      %s75 = int_to_ptr.vmem [resolvable:$true] %s74
      %80 = dma.hbm_to_vmem [thread:$0]  %s5, 384, %s75, [#allocation10], 128, 128, 8
    $region25: #{tpu_custom_call.1} parent=1 // pred_fallthru
      _
    // Predicated region
    $region26: #{tpu_custom_call.1} parent=1 // pred_check
      _
    $region27: #{tpu_custom_call.1} parent=1 // pred_check_branch
      %82 = sbr.rel (0) target = $region29
    $region28: #{tpu_custom_call.1} parent=1 // pred_region
      _
    $region29: #{tpu_custom_call.1} parent=1 // pred_fallthru
      _
    // Predicated region
    $region30: #{tpu_custom_call.1} parent=1 // pred_check
      _
    $region31: #{tpu_custom_call.1} parent=1 // pred_check_branch
      %84 = sbr.rel (0) target = $region33
    $region32: #{tpu_custom_call.1} parent=1 // pred_region
      %s86 = ssub.s32 640, 640
      %87 = vsyncadd [#allocation13], %s86
      %s88 = sshll.u32 [#allocation12], 4
      %s89 = int_to_ptr.vmem [resolvable:$true] %s88
      %94 = dma.hbm_to_vmem [thread:$0]  %s7, 640, %s89, [#allocation13], 128, 128, 8
    $region33: #{tpu_custom_call.1} parent=1 // pred_fallthru
      _
    // Predicated region
    $region34: #{tpu_custom_call.1} parent=1 // pred_check
      _
    $region35: #{tpu_custom_call.1} parent=1 // pred_check_branch
      %96 = sbr.rel (0) target = $region37
    $region36: #{tpu_custom_call.1} parent=1 // pred_region
      _
    $region37: #{tpu_custom_call.1} parent=1 // pred_fallthru
      _
    // Predicated region
    $region38: #{tpu_custom_call.1} parent=1 // pred_check
      _
    $region39: #{tpu_custom_call.1} parent=1 // pred_check_branch
      %98 = sbr.rel (0) target = $region41
    $region40: #{tpu_custom_call.1} parent=1 // pred_region
      %99 = dma.done [#allocation4], 256
    $region41: #{tpu_custom_call.1} parent=1 // pred_fallthru
      _
    // Predicated region
    $region42: #{tpu_custom_call.1} parent=1 // pred_check
      _
    $region43: #{tpu_custom_call.1} parent=1 // pred_check_branch
      %101 = sbr.rel (0) target = $region45
    $region44: #{tpu_custom_call.1} parent=1 // pred_region
      %102 = dma.done [#allocation7], 256
    $region45: #{tpu_custom_call.1} parent=1 // pred_fallthru
      _
    // Predicated region
    $region46: #{tpu_custom_call.1} parent=1 // pred_check
      _
    $region47: #{tpu_custom_call.1} parent=1 // pred_check_branch
      %104 = sbr.rel (0) target = $region49
    $region48: #{tpu_custom_call.1} parent=1 // pred_region
      %105 = dma.done [#allocation7], 256
    $region49: #{tpu_custom_call.1} parent=1 // pred_fallthru
      _
    // Predicated region
    $region50: #{tpu_custom_call.1} parent=1 // pred_check
      _
    $region51: #{tpu_custom_call.1} parent=1 // pred_check_branch
      %107 = sbr.rel (0) target = $region53
    $region52: #{tpu_custom_call.1} parent=1 // pred_region
      %108 = dma.done [#allocation10], 512
    $region53: #{tpu_custom_call.1} parent=1 // pred_fallthru
      _
    // Predicated region
    $region54: #{tpu_custom_call.1} parent=1 // pred_check
      _
    $region55: #{tpu_custom_call.1} parent=1 // pred_check_branch
      %110 = sbr.rel (0) target = $region57
    $region56: #{tpu_custom_call.1} parent=1 // pred_region
      %111 = dma.done [#allocation10], 384
    $region57: #{tpu_custom_call.1} parent=1 // pred_fallthru
      _
    // Predicated region
    $region58: #{tpu_custom_call.1} parent=1 // pred_check
      _
    $region59: #{tpu_custom_call.1} parent=1 // pred_check_branch
      %113 = sbr.rel (0) target = $region61
    $region60: #{tpu_custom_call.1} parent=1 // pred_region
      %114 = dma.done [#allocation13], 640
    $region61: #{tpu_custom_call.1} parent=1 // pred_fallthru
      _
    %v115 = vld [vmem:[#allocation3] sm:$0xff]
    %v116 = vld [vmem:[#allocation3 + $0x8] sm:$0xff]
    %v117 = vld [vmem:[#allocation6] sm:$0xff]
    %v118 = vld [vmem:[#allocation6 + $0x8] sm:$0xff]
    %v119 = vld [vmem:[#allocation8] sm:$0xff]
    %v120 = vld [vmem:[#allocation8 + $0x8] sm:$0xff]
    %v121 = vld [vmem:[#allocation9] sm:$0xff]
    %v122 = vld [vmem:[#allocation9 + $0x8] sm:$0xff]
    %v123 = vld [vmem:[#allocation9 + $0x10] sm:$0xff]
    %v124 = vld [vmem:[#allocation9 + $0x18] sm:$0xff]
    %v125 = vld [vmem:[%s4] sm:$0x1]
    %v127 = vlaneseq
    %v128 = vshrl.u32 %v127, 7
    %v129 = vsub.s32 0, %v128
    %v130 = vrot.slane %v125, %v129
    %vm132 = vcmask 261120
    %v134 = vsel %vm132, %v115, 0
    %v137 = vsel %vm132, %v116, 0
    %139 = vmatprep.subr.mxu0 0.0
    %140 = vmatpush1.msra.mxu0 %v121
    %141 = vmatprep.subr.mxu0 0.0
    %142 = vmatpush1.msra.mxu0 %v122
    %143 = vmatprep.subr.mxu0 0.0
    %144 = vmatpush1.msra.mxu0 %v123
    %145 = vmatprep.subr.mxu0 0.0
    %146 = vmatpush1.msra.mxu0 %v124
    %147 = vmatprep.subr.mxu0 0.0
    %148 = vmatpush1.msra.mxu0 0.0
    %149 = vmatprep.subr.mxu0 0.0
    %150 = vmatpush1.msra.mxu0 0.0
    %151 = vmatprep.subr.mxu0 0.0
    %152 = vmatpush1.msra.mxu0 0.0
    %153 = vmatprep.subr.mxu0 0.0
    %154 = vmatpush1.msra.mxu0 0.0
    %155 = vmatprep.subr.mxu0 0.0
    %156 = vmatpush1.msra.mxu0 0.0
    %157 = vmatprep.subr.mxu0 0.0
    %158 = vmatpush1.msra.mxu0 0.0
    %159 = vmatprep.subr.mxu0 0.0
    %160 = vmatpush1.msra.mxu0 0.0
    %161 = vmatprep.subr.mxu0 0.0
    %162 = vmatpush1.msra.mxu0 0.0
    %163 = vmatprep.subr.mxu0 0.0
    %164 = vmatpush1.msra.mxu0 0.0
    %165 = vmatprep.subr.mxu0 0.0
    %166 = vmatpush1.msra.mxu0 0.0
    %167 = vmatprep.subr.mxu0 0.0
    %168 = vmatpush1.msra.mxu0 0.0
    %169 = vmatprep.subr.mxu0 0.0
    %170 = vmatpush1.msra.mxu0 0.0
    %171 = vmatprep.subr.mxu0 0.0
    %172 = vmatpush1.msra.mxu0 0.0
    %173 = vmatprep.subr.mxu0 0.0
    %174 = vmatpush1.msra.mxu0 0.0
    %175 = vmatprep.subr.mxu0 0.0
    %176 = vmatpush1.msra.mxu0 0.0
    %177 = vmatprep.subr.mxu0 0.0
    %178 = vmatpush1.msra.mxu0 0.0
    %179 = vmatprep.subr.mxu0 0.0
    %180 = vmatpush1.msra.mxu0 0.0
    %181 = vmatprep.subr.mxu0 0.0
    %182 = vmatpush1.msra.mxu0 0.0
    %183 = vmatprep.subr.mxu0 0.0
    %184 = vmatpush1.msra.mxu0 0.0
    %185 = vmatprep.subr.mxu0 0.0
    %186 = vmatpush1.msra.mxu0 0.0
    %187 = vmatprep.subr.mxu0 0.0
    %188 = vmatpush1.msra.mxu0 0.0
    %189 = vmatprep.subr.mxu0 0.0
    %190 = vmatpush1.msra.mxu0 0.0
    %191 = vmatprep.subr.mxu0 0.0
    %192 = vmatpush1.msra.mxu0 0.0
    %193 = vmatprep.subr.mxu0 0.0
    %194 = vmatpush1.msra.mxu0 0.0
    %195 = vmatprep.subr.mxu0 0.0
    %196 = vmatpush1.msra.mxu0 0.0
    %197 = vmatprep.subr.mxu0 0.0
    %198 = vmatpush1.msra.mxu0 0.0
    %199 = vmatprep.subr.mxu0 0.0
    %200 = vmatpush1.msra.mxu0 0.0
    %201 = vmatprep.subr.mxu0 0.0
    %202 = vmatpush1.msra.mxu0 0.0
    %203 = vmatprep.mubr.f32.mxu0 0.0
    %204 = vmatmul.mubr.f32.gmra.mrb[0].mxu0 %v134
    %v205 = vpop.f32.mrb[0].mxu0
    %v206 = vadd.f32 %v130, %v205
    %v207 = vpop.f32.mrb[0].mxu0
    %208 = vmatprep.mubr.f32.mxu0 0.0
    %209 = vmatmul.mubr.f32.gmra.mrb[0].mxu0 %v137
    %v210 = vpop.f32.mrb[0].mxu0
    %v211 = vadd.f32 %v130, %v210
    %v212 = vpop.f32.mrb[0].mxu0
    %213 = vdwg.mxu0
    %v214 = vld [vmem:[#allocation11] sm:$0xff]
    %v215 = vld [vmem:[#allocation11 + $0x8] sm:$0xff]
    %v216 = vld [vmem:[#allocation11 + $0x10] sm:$0xff]
    %v217 = vld [vmem:[%s6] sm:$0x1]
    %v219 = vlaneseq
    %v220 = vshrl.u32 %v219, 7
    %v221 = vsub.s32 0, %v220
    %v222 = vrot.slane %v217, %v221
    %vm224 = vcmask 195584
    %v226 = vsel %vm224, %v117, 0
    %v229 = vsel %vm224, %v118, 0
    %231 = vmatprep.subr.mxu0 0.0
    %232 = vmatpush1.msra.mxu0 %v214
    %233 = vmatprep.subr.mxu0 0.0
    %234 = vmatpush1.msra.mxu0 %v215
    %235 = vmatprep.subr.mxu0 0.0
    %236 = vmatpush1.msra.mxu0 %v216
    %237 = vmatprep.subr.mxu0 0.0
    %238 = vmatpush1.msra.mxu0 0.0
    %239 = vmatprep.subr.mxu0 0.0
    %240 = vmatpush1.msra.mxu0 0.0
    %241 = vmatprep.subr.mxu0 0.0
    %242 = vmatpush1.msra.mxu0 0.0
    %243 = vmatprep.subr.mxu0 0.0
    %244 = vmatpush1.msra.mxu0 0.0
    %245 = vmatprep.subr.mxu0 0.0
    %246 = vmatpush1.msra.mxu0 0.0
    %247 = vmatprep.subr.mxu0 0.0
    %248 = vmatpush1.msra.mxu0 0.0
    %249 = vmatprep.subr.mxu0 0.0
    %250 = vmatpush1.msra.mxu0 0.0
    %251 = vmatprep.subr.mxu0 0.0
    %252 = vmatpush1.msra.mxu0 0.0
    %253 = vmatprep.subr.mxu0 0.0
    %254 = vmatpush1.msra.mxu0 0.0
    %255 = vmatprep.subr.mxu0 0.0
    %256 = vmatpush1.msra.mxu0 0.0
    %257 = vmatprep.subr.mxu0 0.0
    %258 = vmatpush1.msra.mxu0 0.0
    %259 = vmatprep.subr.mxu0 0.0
    %260 = vmatpush1.msra.mxu0 0.0
    %261 = vmatprep.subr.mxu0 0.0
    %262 = vmatpush1.msra.mxu0 0.0
    %263 = vmatprep.subr.mxu0 0.0
    %264 = vmatpush1.msra.mxu0 0.0
    %265 = vmatprep.subr.mxu0 0.0
    %266 = vmatpush1.msra.mxu0 0.0
    %267 = vmatprep.subr.mxu0 0.0
    %268 = vmatpush1.msra.mxu0 0.0
    %269 = vmatprep.subr.mxu0 0.0
    %270 = vmatpush1.msra.mxu0 0.0
    %271 = vmatprep.subr.mxu0 0.0
    %272 = vmatpush1.msra.mxu0 0.0
    %273 = vmatprep.subr.mxu0 0.0
    %274 = vmatpush1.msra.mxu0 0.0
    %275 = vmatprep.subr.mxu0 0.0
    %276 = vmatpush1.msra.mxu0 0.0
    %277 = vmatprep.subr.mxu0 0.0
    %278 = vmatpush1.msra.mxu0 0.0
    %279 = vmatprep.subr.mxu0 0.0
    %280 = vmatpush1.msra.mxu0 0.0
    %281 = vmatprep.subr.mxu0 0.0
    %282 = vmatpush1.msra.mxu0 0.0
    %283 = vmatprep.subr.mxu0 0.0
    %284 = vmatpush1.msra.mxu0 0.0
    %285 = vmatprep.subr.mxu0 0.0
    %286 = vmatpush1.msra.mxu0 0.0
    %287 = vmatprep.subr.mxu0 0.0
    %288 = vmatpush1.msra.mxu0 0.0
    %289 = vmatprep.subr.mxu0 0.0
    %290 = vmatpush1.msra.mxu0 0.0
    %291 = vmatprep.subr.mxu0 0.0
    %292 = vmatpush1.msra.mxu0 0.0
    %293 = vmatprep.subr.mxu0 0.0
    %294 = vmatpush1.msra.mxu0 0.0
    %295 = vmatprep.mubr.f32.mxu0 0.0
    %296 = vmatmul.mubr.f32.gmra.mrb[0].mxu0 %v226
    %v297 = vpop.f32.mrb[0].mxu0
    %v298 = vadd.f32 %v222, %v297
    %v299 = vpop.f32.mrb[0].mxu0
    %300 = vmatprep.mubr.f32.mxu0 0.0
    %301 = vmatmul.mubr.f32.gmra.mrb[0].mxu0 %v229
    %v302 = vpop.f32.mrb[0].mxu0
    %v303 = vadd.f32 %v222, %v302
    %v304 = vpop.f32.mrb[0].mxu0
    %305 = vdwg.mxu0
    %v306 = vld [vmem:[#allocation12] sm:$0xff]
    %v307 = vld [vmem:[#allocation12 + $0x8] sm:$0xff]
    %v308 = vld [vmem:[#allocation12 + $0x10] sm:$0xff]
    %v309 = vld [vmem:[#allocation12 + $0x18] sm:$0xff]
    %v310 = vld [vmem:[#allocation12 + $0x20] sm:$0xff]
    %v311 = vld [vmem:[%s8] sm:$0x1]
    %v313 = vlaneseq
    %v314 = vshrl.u32 %v313, 7
    %v315 = vsub.s32 0, %v314
    %v316 = vrot.slane %v311, %v315
    %vm318 = vcmask 326656
    %v320 = vsel %vm318, %v119, 0
    %v323 = vsel %vm318, %v120, 0
    %325 = vmatprep.subr.mxu0 0.0
    %326 = vmatpush1.msra.mxu0 %v306
    %327 = vmatprep.subr.mxu0 0.0
    %328 = vmatpush1.msra.mxu0 %v307
    %329 = vmatprep.subr.mxu0 0.0
    %330 = vmatpush1.msra.mxu0 %v308
    %331 = vmatprep.subr.mxu0 0.0
    %332 = vmatpush1.msra.mxu0 %v309
    %333 = vmatprep.subr.mxu0 0.0
    %334 = vmatpush1.msra.mxu0 %v310
    %335 = vmatprep.subr.mxu0 0.0
    %336 = vmatpush1.msra.mxu0 0.0
    %337 = vmatprep.subr.mxu0 0.0
    %338 = vmatpush1.msra.mxu0 0.0
    %339 = vmatprep.subr.mxu0 0.0
    %340 = vmatpush1.msra.mxu0 0.0
    %341 = vmatprep.subr.mxu0 0.0
    %342 = vmatpush1.msra.mxu0 0.0
    %343 = vmatprep.subr.mxu0 0.0
    %344 = vmatpush1.msra.mxu0 0.0
    %345 = vmatprep.subr.mxu0 0.0
    %346 = vmatpush1.msra.mxu0 0.0
    %347 = vmatprep.subr.mxu0 0.0
    %348 = vmatpush1.msra.mxu0 0.0
    %349 = vmatprep.subr.mxu0 0.0
    %350 = vmatpush1.msra.mxu0 0.0
    %351 = vmatprep.subr.mxu0 0.0
    %352 = vmatpush1.msra.mxu0 0.0
    %353 = vmatprep.subr.mxu0 0.0
    %354 = vmatpush1.msra.mxu0 0.0
    %355 = vmatprep.subr.mxu0 0.0
    %356 = vmatpush1.msra.mxu0 0.0
    %357 = vmatprep.subr.mxu0 0.0
    %358 = vmatpush1.msra.mxu0 0.0
    %359 = vmatprep.subr.mxu0 0.0
    %360 = vmatpush1.msra.mxu0 0.0
    %361 = vmatprep.subr.mxu0 0.0
    %362 = vmatpush1.msra.mxu0 0.0
    %363 = vmatprep.subr.mxu0 0.0
    %364 = vmatpush1.msra.mxu0 0.0
    %365 = vmatprep.subr.mxu0 0.0
    %366 = vmatpush1.msra.mxu0 0.0
    %367 = vmatprep.subr.mxu0 0.0
    %368 = vmatpush1.msra.mxu0 0.0
    %369 = vmatprep.subr.mxu0 0.0
    %370 = vmatpush1.msra.mxu0 0.0
    %371 = vmatprep.subr.mxu0 0.0
    %372 = vmatpush1.msra.mxu0 0.0
    %373 = vmatprep.subr.mxu0 0.0
    %374 = vmatpush1.msra.mxu0 0.0
    %375 = vmatprep.subr.mxu0 0.0
    %376 = vmatpush1.msra.mxu0 0.0
    %377 = vmatprep.subr.mxu0 0.0
    %378 = vmatpush1.msra.mxu0 0.0
    %379 = vmatprep.subr.mxu0 0.0
    %380 = vmatpush1.msra.mxu0 0.0
    %381 = vmatprep.subr.mxu0 0.0
    %382 = vmatpush1.msra.mxu0 0.0
    %383 = vmatprep.subr.mxu0 0.0
    %384 = vmatpush1.msra.mxu0 0.0
    %385 = vmatprep.subr.mxu0 0.0
    %386 = vmatpush1.msra.mxu0 0.0
    %387 = vmatprep.subr.mxu0 0.0
    %388 = vmatpush1.msra.mxu0 0.0
    %389 = vmatprep.mubr.f32.mxu0 0.0
    %390 = vmatmul.mubr.f32.gmra.mrb[0].mxu0 %v320
    %v391 = vpop.f32.mrb[0].mxu0
    %v392 = vadd.f32 %v316, %v391
    %v393 = vpop.f32.mrb[0].mxu0
    %394 = vmatprep.mubr.f32.mxu0 0.0
    %395 = vmatmul.mubr.f32.gmra.mrb[0].mxu0 %v323
    %v396 = vpop.f32.mrb[0].mxu0
    %v397 = vadd.f32 %v316, %v396
    %v398 = vpop.f32.mrb[0].mxu0
    %399 = vdwg.mxu0
    %vm400 = vcmask 130048
    %v402 = vsel %vm400, %v206, 0
    %v405 = vsel %vm400, %v298, 0
    %407 = vmatprep.subr.mxu0 0.0
    %408 = vmatpush1.xpose.msra.mxu0 %v405
    %409 = vmatprep.subr.mxu0 0.0
    %410 = vmatpush1.xpose.msra.mxu0 0.0
    %411 = vmatprep.subr.mxu0 0.0
    %412 = vmatpush1.xpose.msra.mxu0 0.0
    %413 = vmatprep.subr.mxu0 0.0
    %414 = vmatpush1.xpose.msra.mxu0 0.0
    %415 = vmatprep.subr.mxu0 0.0
    %416 = vmatpush1.xpose.msra.mxu0 0.0
    %417 = vmatprep.subr.mxu0 0.0
    %418 = vmatpush1.xpose.msra.mxu0 0.0
    %419 = vmatprep.subr.mxu0 0.0
    %420 = vmatpush1.xpose.msra.mxu0 0.0
    %421 = vmatprep.subr.mxu0 0.0
    %422 = vmatpush1.xpose.msra.mxu0 0.0
    %423 = vmatprep.subr.mxu0 0.0
    %424 = vmatpush1.xpose.msra.mxu0 0.0
    %425 = vmatprep.subr.mxu0 0.0
    %426 = vmatpush1.xpose.msra.mxu0 0.0
    %427 = vmatprep.subr.mxu0 0.0
    %428 = vmatpush1.xpose.msra.mxu0 0.0
    %429 = vmatprep.subr.mxu0 0.0
    %430 = vmatpush1.xpose.msra.mxu0 0.0
    %431 = vmatprep.subr.mxu0 0.0
    %432 = vmatpush1.xpose.msra.mxu0 0.0
    %433 = vmatprep.subr.mxu0 0.0
    %434 = vmatpush1.xpose.msra.mxu0 0.0
    %435 = vmatprep.subr.mxu0 0.0
    %436 = vmatpush1.xpose.msra.mxu0 0.0
    %437 = vmatprep.subr.mxu0 0.0
    %438 = vmatpush1.xpose.msra.mxu0 0.0
    %439 = vmatprep.subr.mxu0 0.0
    %440 = vmatpush1.xpose.msra.mxu0 0.0
    %441 = vmatprep.subr.mxu0 0.0
    %442 = vmatpush1.xpose.msra.mxu0 0.0
    %443 = vmatprep.subr.mxu0 0.0
    %444 = vmatpush1.xpose.msra.mxu0 0.0
    %445 = vmatprep.subr.mxu0 0.0
    %446 = vmatpush1.xpose.msra.mxu0 0.0
    %447 = vmatprep.subr.mxu0 0.0
    %448 = vmatpush1.xpose.msra.mxu0 0.0
    %449 = vmatprep.subr.mxu0 0.0
    %450 = vmatpush1.xpose.msra.mxu0 0.0
    %451 = vmatprep.subr.mxu0 0.0
    %452 = vmatpush1.xpose.msra.mxu0 0.0
    %453 = vmatprep.subr.mxu0 0.0
    %454 = vmatpush1.xpose.msra.mxu0 0.0
    %455 = vmatprep.subr.mxu0 0.0
    %456 = vmatpush1.xpose.msra.mxu0 0.0
    %457 = vmatprep.subr.mxu0 0.0
    %458 = vmatpush1.xpose.msra.mxu0 0.0
    %459 = vmatprep.subr.mxu0 0.0
    %460 = vmatpush1.xpose.msra.mxu0 0.0
    %461 = vmatprep.subr.mxu0 0.0
    %462 = vmatpush1.xpose.msra.mxu0 0.0
    %463 = vmatprep.subr.mxu0 0.0
    %464 = vmatpush1.xpose.msra.mxu0 0.0
    %465 = vmatprep.subr.mxu0 0.0
    %466 = vmatpush1.xpose.msra.mxu0 0.0
    %467 = vmatprep.subr.mxu0 0.0
    %468 = vmatpush1.xpose.msra.mxu0 0.0
    %469 = vmatprep.subr.mxu0 0.0
    %470 = vmatpush1.xpose.msra.mxu0 0.0
    %471 = vmatprep.mubr.f32.mxu0 0.0
    %472 = vmatmul.mubr.f32.gmra.mrb[0].mxu0 %v402
    %v473 = vpop.f32.mrb[0].mxu0
    %v474 = vadd.f32 0.0, %v473
    %v475 = vpop.f32.mrb[0].mxu0
    %476 = vdwg.mxu0
    %v478 = vsel %vm400, %v211, 0
    %v481 = vsel %vm400, %v303, 0
    %483 = vmatprep.subr.mxu0 0.0
    %484 = vmatpush1.xpose.msra.mxu0 %v481
    %485 = vmatprep.subr.mxu0 0.0
    %486 = vmatpush1.xpose.msra.mxu0 0.0
    %487 = vmatprep.subr.mxu0 0.0
    %488 = vmatpush1.xpose.msra.mxu0 0.0
    %489 = vmatprep.subr.mxu0 0.0
    %490 = vmatpush1.xpose.msra.mxu0 0.0
    %491 = vmatprep.subr.mxu0 0.0
    %492 = vmatpush1.xpose.msra.mxu0 0.0
    %493 = vmatprep.subr.mxu0 0.0
    %494 = vmatpush1.xpose.msra.mxu0 0.0
    %495 = vmatprep.subr.mxu0 0.0
    %496 = vmatpush1.xpose.msra.mxu0 0.0
    %497 = vmatprep.subr.mxu0 0.0
    %498 = vmatpush1.xpose.msra.mxu0 0.0
    %499 = vmatprep.subr.mxu0 0.0
    %500 = vmatpush1.xpose.msra.mxu0 0.0
    %501 = vmatprep.subr.mxu0 0.0
    %502 = vmatpush1.xpose.msra.mxu0 0.0
    %503 = vmatprep.subr.mxu0 0.0
    %504 = vmatpush1.xpose.msra.mxu0 0.0
    %505 = vmatprep.subr.mxu0 0.0
    %506 = vmatpush1.xpose.msra.mxu0 0.0
    %507 = vmatprep.subr.mxu0 0.0
    %508 = vmatpush1.xpose.msra.mxu0 0.0
    %509 = vmatprep.subr.mxu0 0.0
    %510 = vmatpush1.xpose.msra.mxu0 0.0
    %511 = vmatprep.subr.mxu0 0.0
    %512 = vmatpush1.xpose.msra.mxu0 0.0
    %513 = vmatprep.subr.mxu0 0.0
    %514 = vmatpush1.xpose.msra.mxu0 0.0
    %515 = vmatprep.subr.mxu0 0.0
    %516 = vmatpush1.xpose.msra.mxu0 0.0
    %517 = vmatprep.subr.mxu0 0.0
    %518 = vmatpush1.xpose.msra.mxu0 0.0
    %519 = vmatprep.subr.mxu0 0.0
    %520 = vmatpush1.xpose.msra.mxu0 0.0
    %521 = vmatprep.subr.mxu0 0.0
    %522 = vmatpush1.xpose.msra.mxu0 0.0
    %523 = vmatprep.subr.mxu0 0.0
    %524 = vmatpush1.xpose.msra.mxu0 0.0
    %525 = vmatprep.subr.mxu0 0.0
    %526 = vmatpush1.xpose.msra.mxu0 0.0
    %527 = vmatprep.subr.mxu0 0.0
    %528 = vmatpush1.xpose.msra.mxu0 0.0
    %529 = vmatprep.subr.mxu0 0.0
    %530 = vmatpush1.xpose.msra.mxu0 0.0
    %531 = vmatprep.subr.mxu0 0.0
    %532 = vmatpush1.xpose.msra.mxu0 0.0
    %533 = vmatprep.subr.mxu0 0.0
    %534 = vmatpush1.xpose.msra.mxu0 0.0
    %535 = vmatprep.subr.mxu0 0.0
    %536 = vmatpush1.xpose.msra.mxu0 0.0
    %537 = vmatprep.subr.mxu0 0.0
    %538 = vmatpush1.xpose.msra.mxu0 0.0
    %539 = vmatprep.subr.mxu0 0.0
    %540 = vmatpush1.xpose.msra.mxu0 0.0
    %541 = vmatprep.subr.mxu0 0.0
    %542 = vmatpush1.xpose.msra.mxu0 0.0
    %543 = vmatprep.subr.mxu0 0.0
    %544 = vmatpush1.xpose.msra.mxu0 0.0
    %545 = vmatprep.subr.mxu0 0.0
    %546 = vmatpush1.xpose.msra.mxu0 0.0
    %547 = vmatprep.mubr.f32.mxu0 0.0
    %548 = vmatmul.mubr.f32.gmra.mrb[0].mxu0 %v478
    %v549 = vpop.f32.mrb[0].mxu0
    %v550 = vadd.f32 0.0, %v549
    %v551 = vpop.f32.mrb[0].mxu0
    %552 = vdwg.mxu0
    %vm553 = vcmask 64512
    %554 = vst.msk [vmem:[#allocation2] sm:$0xff] %vm553, %v474
    %555 = vst.msk [vmem:[#allocation2 + $0x8] sm:$0xff] %vm553, %v550
    %556 = vrot.lane.b32.xlu0 %v206, 112
    %v557 = vpop.permute.xlu0 %556
    %558 = vrot.lane.b32.xlu0 %v298, 112
    %v559 = vpop.permute.xlu0 %558
    %v560 = vsel %vm400, %v557, 0
    %v562 = vsel %vm400, %v559, 0
    %564 = vmatprep.subr.mxu0 0.0
    %565 = vmatpush1.xpose.msra.mxu0 %v562
    %566 = vmatprep.subr.mxu0 0.0
    %567 = vmatpush1.xpose.msra.mxu0 0.0
    %568 = vmatprep.subr.mxu0 0.0
    %569 = vmatpush1.xpose.msra.mxu0 0.0
    %570 = vmatprep.subr.mxu0 0.0
    %571 = vmatpush1.xpose.msra.mxu0 0.0
    %572 = vmatprep.subr.mxu0 0.0
    %573 = vmatpush1.xpose.msra.mxu0 0.0
    %574 = vmatprep.subr.mxu0 0.0
    %575 = vmatpush1.xpose.msra.mxu0 0.0
    %576 = vmatprep.subr.mxu0 0.0
    %577 = vmatpush1.xpose.msra.mxu0 0.0
    %578 = vmatprep.subr.mxu0 0.0
    %579 = vmatpush1.xpose.msra.mxu0 0.0
    %580 = vmatprep.subr.mxu0 0.0
    %581 = vmatpush1.xpose.msra.mxu0 0.0
    %582 = vmatprep.subr.mxu0 0.0
    %583 = vmatpush1.xpose.msra.mxu0 0.0
    %584 = vmatprep.subr.mxu0 0.0
    %585 = vmatpush1.xpose.msra.mxu0 0.0
    %586 = vmatprep.subr.mxu0 0.0
    %587 = vmatpush1.xpose.msra.mxu0 0.0
    %588 = vmatprep.subr.mxu0 0.0
    %589 = vmatpush1.xpose.msra.mxu0 0.0
    %590 = vmatprep.subr.mxu0 0.0
    %591 = vmatpush1.xpose.msra.mxu0 0.0
    %592 = vmatprep.subr.mxu0 0.0
    %593 = vmatpush1.xpose.msra.mxu0 0.0
    %594 = vmatprep.subr.mxu0 0.0
    %595 = vmatpush1.xpose.msra.mxu0 0.0
    %596 = vmatprep.subr.mxu0 0.0
    %597 = vmatpush1.xpose.msra.mxu0 0.0
    %598 = vmatprep.subr.mxu0 0.0
    %599 = vmatpush1.xpose.msra.mxu0 0.0
    %600 = vmatprep.subr.mxu0 0.0
    %601 = vmatpush1.xpose.msra.mxu0 0.0
    %602 = vmatprep.subr.mxu0 0.0
    %603 = vmatpush1.xpose.msra.mxu0 0.0
    %604 = vmatprep.subr.mxu0 0.0
    %605 = vmatpush1.xpose.msra.mxu0 0.0
    %606 = vmatprep.subr.mxu0 0.0
    %607 = vmatpush1.xpose.msra.mxu0 0.0
    %608 = vmatprep.subr.mxu0 0.0
    %609 = vmatpush1.xpose.msra.mxu0 0.0
    %610 = vmatprep.subr.mxu0 0.0
    %611 = vmatpush1.xpose.msra.mxu0 0.0
    %612 = vmatprep.subr.mxu0 0.0
    %613 = vmatpush1.xpose.msra.mxu0 0.0
    %614 = vmatprep.subr.mxu0 0.0
    %615 = vmatpush1.xpose.msra.mxu0 0.0
    %616 = vmatprep.subr.mxu0 0.0
    %617 = vmatpush1.xpose.msra.mxu0 0.0
    %618 = vmatprep.subr.mxu0 0.0
    %619 = vmatpush1.xpose.msra.mxu0 0.0
    %620 = vmatprep.subr.mxu0 0.0
    %621 = vmatpush1.xpose.msra.mxu0 0.0
    %622 = vmatprep.subr.mxu0 0.0
    %623 = vmatpush1.xpose.msra.mxu0 0.0
    %624 = vmatprep.subr.mxu0 0.0
    %625 = vmatpush1.xpose.msra.mxu0 0.0
    %626 = vmatprep.subr.mxu0 0.0
    %627 = vmatpush1.xpose.msra.mxu0 0.0
    %628 = vmatprep.mubr.f32.mxu0 0.0
    %629 = vmatmul.mubr.f32.gmra.mrb[0].mxu0 %v560
    %v630 = vpop.f32.mrb[0].mxu0
    %v631 = vadd.f32 0.0, %v630
    %v632 = vpop.f32.mrb[0].mxu0
    %633 = vdwg.mxu0
    %634 = vrot.lane.b32.xlu0 %v211, 112
    %v635 = vpop.permute.xlu0 %634
    %636 = vrot.lane.b32.xlu0 %v303, 112
    %v637 = vpop.permute.xlu0 %636
    %v638 = vsel %vm400, %v635, 0
    %v640 = vsel %vm400, %v637, 0
    %642 = vmatprep.subr.mxu0 0.0
    %643 = vmatpush1.xpose.msra.mxu0 %v640
    %644 = vmatprep.subr.mxu0 0.0
    %645 = vmatpush1.xpose.msra.mxu0 0.0
    %646 = vmatprep.subr.mxu0 0.0
    %647 = vmatpush1.xpose.msra.mxu0 0.0
    %648 = vmatprep.subr.mxu0 0.0
    %649 = vmatpush1.xpose.msra.mxu0 0.0
    %650 = vmatprep.subr.mxu0 0.0
    %651 = vmatpush1.xpose.msra.mxu0 0.0
    %652 = vmatprep.subr.mxu0 0.0
    %653 = vmatpush1.xpose.msra.mxu0 0.0
    %654 = vmatprep.subr.mxu0 0.0
    %655 = vmatpush1.xpose.msra.mxu0 0.0
    %656 = vmatprep.subr.mxu0 0.0
    %657 = vmatpush1.xpose.msra.mxu0 0.0
    %658 = vmatprep.subr.mxu0 0.0
    %659 = vmatpush1.xpose.msra.mxu0 0.0
    %660 = vmatprep.subr.mxu0 0.0
    %661 = vmatpush1.xpose.msra.mxu0 0.0
    %662 = vmatprep.subr.mxu0 0.0
    %663 = vmatpush1.xpose.msra.mxu0 0.0
    %664 = vmatprep.subr.mxu0 0.0
    %665 = vmatpush1.xpose.msra.mxu0 0.0
    %666 = vmatprep.subr.mxu0 0.0
    %667 = vmatpush1.xpose.msra.mxu0 0.0
    %668 = vmatprep.subr.mxu0 0.0
    %669 = vmatpush1.xpose.msra.mxu0 0.0
    %670 = vmatprep.subr.mxu0 0.0
    %671 = vmatpush1.xpose.msra.mxu0 0.0
    %672 = vmatprep.subr.mxu0 0.0
    %673 = vmatpush1.xpose.msra.mxu0 0.0
    %674 = vmatprep.subr.mxu0 0.0
    %675 = vmatpush1.xpose.msra.mxu0 0.0
    %676 = vmatprep.subr.mxu0 0.0
    %677 = vmatpush1.xpose.msra.mxu0 0.0
    %678 = vmatprep.subr.mxu0 0.0
    %679 = vmatpush1.xpose.msra.mxu0 0.0
    %680 = vmatprep.subr.mxu0 0.0
    %681 = vmatpush1.xpose.msra.mxu0 0.0
    %682 = vmatprep.subr.mxu0 0.0
    %683 = vmatpush1.xpose.msra.mxu0 0.0
    %684 = vmatprep.subr.mxu0 0.0
    %685 = vmatpush1.xpose.msra.mxu0 0.0
    %686 = vmatprep.subr.mxu0 0.0
    %687 = vmatpush1.xpose.msra.mxu0 0.0
    %688 = vmatprep.subr.mxu0 0.0
    %689 = vmatpush1.xpose.msra.mxu0 0.0
    %690 = vmatprep.subr.mxu0 0.0
    %691 = vmatpush1.xpose.msra.mxu0 0.0
    %692 = vmatprep.subr.mxu0 0.0
    %693 = vmatpush1.xpose.msra.mxu0 0.0
    %694 = vmatprep.subr.mxu0 0.0
    %695 = vmatpush1.xpose.msra.mxu0 0.0
    %696 = vmatprep.subr.mxu0 0.0
    %697 = vmatpush1.xpose.msra.mxu0 0.0
    %698 = vmatprep.subr.mxu0 0.0
    %699 = vmatpush1.xpose.msra.mxu0 0.0
    %700 = vmatprep.subr.mxu0 0.0
    %701 = vmatpush1.xpose.msra.mxu0 0.0
    %702 = vmatprep.subr.mxu0 0.0
    %703 = vmatpush1.xpose.msra.mxu0 0.0
    %704 = vmatprep.subr.mxu0 0.0
    %705 = vmatpush1.xpose.msra.mxu0 0.0
    %706 = vmatprep.mubr.f32.mxu0 0.0
    %707 = vmatmul.mubr.f32.gmra.mrb[0].mxu0 %v638
    %v708 = vpop.f32.mrb[0].mxu0
    %v709 = vadd.f32 0.0, %v708
    %v710 = vpop.f32.mrb[0].mxu0
    %711 = vdwg.mxu0
    %s712 = scalar_lea.vmem [#allocation2], 16
    %713 = vst.msk [vmem:[%s712] sm:$0xff] %vm553, %v631
    %714 = vst.msk [vmem:[%s712 + $0x8] sm:$0xff] %vm553, %v709
    %v715 = vld [vmem:[#allocation2] sm:$0xff]
    %v716 = vld [vmem:[#allocation2 + $0x8] sm:$0xff]
    %v717 = vld [vmem:[#allocation2 + $0x10] sm:$0xff]
    %v718 = vld [vmem:[#allocation2 + $0x18] sm:$0xff]
    %v719 = vsel %vm553, %v715, -inf
    %v720 = vsel %vm553, %v716, -inf
    %v721 = vsel %vm553, %v717, -inf
    %v722 = vsel %vm553, %v718, -inf
    %v723 = vmax.f32 %v719, %v720
    %v724 = vmax.f32 %v721, %v722
    %v725 = vmax.f32 %v723, %v724
    %v726 = vsub.f32 %v715, %v725
    %v727 = vsub.f32 %v716, %v725
    %v728 = vsub.f32 %v717, %v725
    %v729 = vsub.f32 %v718, %v725
    %v730 = vmul.f32 %v726, 1.442695
    %v731 = vpow.pop %v730
    %v732 = vmul.f32 %v727, 1.442695
    %v733 = vpow.pop %v732
    %v734 = vmul.f32 %v728, 1.442695
    %v735 = vpow.pop %v734
    %v736 = vmul.f32 %v729, 1.442695
    %v737 = vpow.pop %v736
    %v738 = vsel %vm553, %v731, 0.0
    %v739 = vsel %vm553, %v733, 0.0
    %v740 = vadd.f32 %v738, %v739
    %v741 = vsel %vm553, %v735, 0.0
    %v742 = vadd.f32 %v740, %v741
    %v743 = vsel %vm553, %v737, 0.0
    %v744 = vadd.f32 %v742, %v743
    %v745 = vrcp.pop %v744
    %v746 = vmul.f32 1.0, %v745
    %v747 = vmul.f32 %v731, %v746
    %v748 = vmul.f32 %v733, %v746
    %v749 = vmul.f32 %v735, %v746
    %v750 = vmul.f32 %v737, %v746
    %v752 = vsel %vm553, %v747, 0
    %754 = vmatprep.subr.mxu0 0.0
    %755 = vmatpush1.msra.mxu0 %v392
    %756 = vmatprep.subr.mxu0 0.0
    %757 = vmatpush1.msra.mxu0 0.0
    %758 = vmatprep.subr.mxu0 0.0
    %759 = vmatpush1.msra.mxu0 0.0
    %760 = vmatprep.subr.mxu0 0.0
    %761 = vmatpush1.msra.mxu0 0.0
    %762 = vmatprep.subr.mxu0 0.0
    %763 = vmatpush1.msra.mxu0 0.0
    %764 = vmatprep.subr.mxu0 0.0
    %765 = vmatpush1.msra.mxu0 0.0
    %766 = vmatprep.subr.mxu0 0.0
    %767 = vmatpush1.msra.mxu0 0.0
    %768 = vmatprep.subr.mxu0 0.0
    %769 = vmatpush1.msra.mxu0 0.0
    %770 = vmatprep.subr.mxu0 0.0
    %771 = vmatpush1.msra.mxu0 0.0
    %772 = vmatprep.subr.mxu0 0.0
    %773 = vmatpush1.msra.mxu0 0.0
    %774 = vmatprep.subr.mxu0 0.0
    %775 = vmatpush1.msra.mxu0 0.0
    %776 = vmatprep.subr.mxu0 0.0
    %777 = vmatpush1.msra.mxu0 0.0
    %778 = vmatprep.subr.mxu0 0.0
    %779 = vmatpush1.msra.mxu0 0.0
    %780 = vmatprep.subr.mxu0 0.0
    %781 = vmatpush1.msra.mxu0 0.0
    %782 = vmatprep.subr.mxu0 0.0
    %783 = vmatpush1.msra.mxu0 0.0
    %784 = vmatprep.subr.mxu0 0.0
    %785 = vmatpush1.msra.mxu0 0.0
    %786 = vmatprep.subr.mxu0 0.0
    %787 = vmatpush1.msra.mxu0 0.0
    %788 = vmatprep.subr.mxu0 0.0
    %789 = vmatpush1.msra.mxu0 0.0
    %790 = vmatprep.subr.mxu0 0.0
    %791 = vmatpush1.msra.mxu0 0.0
    %792 = vmatprep.subr.mxu0 0.0
    %793 = vmatpush1.msra.mxu0 0.0
    %794 = vmatprep.subr.mxu0 0.0
    %795 = vmatpush1.msra.mxu0 0.0
    %796 = vmatprep.subr.mxu0 0.0
    %797 = vmatpush1.msra.mxu0 0.0
    %798 = vmatprep.subr.mxu0 0.0
    %799 = vmatpush1.msra.mxu0 0.0
    %800 = vmatprep.subr.mxu0 0.0
    %801 = vmatpush1.msra.mxu0 0.0
    %802 = vmatprep.subr.mxu0 0.0
    %803 = vmatpush1.msra.mxu0 0.0
    %804 = vmatprep.subr.mxu0 0.0
    %805 = vmatpush1.msra.mxu0 0.0
    %806 = vmatprep.subr.mxu0 0.0
    %807 = vmatpush1.msra.mxu0 0.0
    %808 = vmatprep.subr.mxu0 0.0
    %809 = vmatpush1.msra.mxu0 0.0
    %810 = vmatprep.subr.mxu0 0.0
    %811 = vmatpush1.msra.mxu0 0.0
    %812 = vmatprep.subr.mxu0 0.0
    %813 = vmatpush1.msra.mxu0 0.0
    %814 = vmatprep.subr.mxu0 0.0
    %815 = vmatpush1.msra.mxu0 0.0
    %816 = vmatprep.subr.mxu0 0.0
    %817 = vmatpush1.msra.mxu0 0.0
    %818 = vmatprep.mubr.f32.mxu0 0.0
    %819 = vmatmul.mubr.f32.gmra.mrb[0].mxu0 %v752
    %v820 = vpop.f32.mrb[0].mxu0
    %v821 = vadd.f32 0.0, %v820
    %v822 = vpop.f32.mrb[0].mxu0
    %823 = vdwg.mxu0
    %v825 = vsel %vm553, %v748, 0
    %827 = vmatprep.subr.mxu0 0.0
    %828 = vmatpush1.msra.mxu0 %v397
    %829 = vmatprep.subr.mxu0 0.0
    %830 = vmatpush1.msra.mxu0 0.0
    %831 = vmatprep.subr.mxu0 0.0
    %832 = vmatpush1.msra.mxu0 0.0
    %833 = vmatprep.subr.mxu0 0.0
    %834 = vmatpush1.msra.mxu0 0.0
    %835 = vmatprep.subr.mxu0 0.0
    %836 = vmatpush1.msra.mxu0 0.0
    %837 = vmatprep.subr.mxu0 0.0
    %838 = vmatpush1.msra.mxu0 0.0
    %839 = vmatprep.subr.mxu0 0.0
    %840 = vmatpush1.msra.mxu0 0.0
    %841 = vmatprep.subr.mxu0 0.0
    %842 = vmatpush1.msra.mxu0 0.0
    %843 = vmatprep.subr.mxu0 0.0
    %844 = vmatpush1.msra.mxu0 0.0
    %845 = vmatprep.subr.mxu0 0.0
    %846 = vmatpush1.msra.mxu0 0.0
    %847 = vmatprep.subr.mxu0 0.0
    %848 = vmatpush1.msra.mxu0 0.0
    %849 = vmatprep.subr.mxu0 0.0
    %850 = vmatpush1.msra.mxu0 0.0
    %851 = vmatprep.subr.mxu0 0.0
    %852 = vmatpush1.msra.mxu0 0.0
    %853 = vmatprep.subr.mxu0 0.0
    %854 = vmatpush1.msra.mxu0 0.0
    %855 = vmatprep.subr.mxu0 0.0
    %856 = vmatpush1.msra.mxu0 0.0
    %857 = vmatprep.subr.mxu0 0.0
    %858 = vmatpush1.msra.mxu0 0.0
    %859 = vmatprep.subr.mxu0 0.0
    %860 = vmatpush1.msra.mxu0 0.0
    %861 = vmatprep.subr.mxu0 0.0
    %862 = vmatpush1.msra.mxu0 0.0
    %863 = vmatprep.subr.mxu0 0.0
    %864 = vmatpush1.msra.mxu0 0.0
    %865 = vmatprep.subr.mxu0 0.0
    %866 = vmatpush1.msra.mxu0 0.0
    %867 = vmatprep.subr.mxu0 0.0
    %868 = vmatpush1.msra.mxu0 0.0
    %869 = vmatprep.subr.mxu0 0.0
    %870 = vmatpush1.msra.mxu0 0.0
    %871 = vmatprep.subr.mxu0 0.0
    %872 = vmatpush1.msra.mxu0 0.0
    %873 = vmatprep.subr.mxu0 0.0
    %874 = vmatpush1.msra.mxu0 0.0
    %875 = vmatprep.subr.mxu0 0.0
    %876 = vmatpush1.msra.mxu0 0.0
    %877 = vmatprep.subr.mxu0 0.0
    %878 = vmatpush1.msra.mxu0 0.0
    %879 = vmatprep.subr.mxu0 0.0
    %880 = vmatpush1.msra.mxu0 0.0
    %881 = vmatprep.subr.mxu0 0.0
    %882 = vmatpush1.msra.mxu0 0.0
    %883 = vmatprep.subr.mxu0 0.0
    %884 = vmatpush1.msra.mxu0 0.0
    %885 = vmatprep.subr.mxu0 0.0
    %886 = vmatpush1.msra.mxu0 0.0
    %887 = vmatprep.subr.mxu0 0.0
    %888 = vmatpush1.msra.mxu0 0.0
    %889 = vmatprep.subr.mxu0 0.0
    %890 = vmatpush1.msra.mxu0 0.0
    %891 = vmatprep.mubr.f32.mxu0 0.0
    %892 = vmatmul.mubr.f32.gmra.mrb[0].mxu0 %v825
    %v893 = vpop.f32.mrb[0].mxu0
    %v894 = vadd.f32 0.0, %v893
    %v895 = vpop.f32.mrb[0].mxu0
    %896 = vdwg.mxu0
    %898 = vrot.lane.b32.xlu0 %v392, 104
    %v899 = vpop.permute.xlu0 %898
    %v902 = vsel %vm553, %v749, 0
    %904 = vmatprep.subr.mxu0 0.0
    %905 = vmatpush1.msra.mxu0 %v899
    %906 = vmatprep.subr.mxu0 0.0
    %907 = vmatpush1.msra.mxu0 0.0
    %908 = vmatprep.subr.mxu0 0.0
    %909 = vmatpush1.msra.mxu0 0.0
    %910 = vmatprep.subr.mxu0 0.0
    %911 = vmatpush1.msra.mxu0 0.0
    %912 = vmatprep.subr.mxu0 0.0
    %913 = vmatpush1.msra.mxu0 0.0
    %914 = vmatprep.subr.mxu0 0.0
    %915 = vmatpush1.msra.mxu0 0.0
    %916 = vmatprep.subr.mxu0 0.0
    %917 = vmatpush1.msra.mxu0 0.0
    %918 = vmatprep.subr.mxu0 0.0
    %919 = vmatpush1.msra.mxu0 0.0
    %920 = vmatprep.subr.mxu0 0.0
    %921 = vmatpush1.msra.mxu0 0.0
    %922 = vmatprep.subr.mxu0 0.0
    %923 = vmatpush1.msra.mxu0 0.0
    %924 = vmatprep.subr.mxu0 0.0
    %925 = vmatpush1.msra.mxu0 0.0
    %926 = vmatprep.subr.mxu0 0.0
    %927 = vmatpush1.msra.mxu0 0.0
    %928 = vmatprep.subr.mxu0 0.0
    %929 = vmatpush1.msra.mxu0 0.0
    %930 = vmatprep.subr.mxu0 0.0
    %931 = vmatpush1.msra.mxu0 0.0
    %932 = vmatprep.subr.mxu0 0.0
    %933 = vmatpush1.msra.mxu0 0.0
    %934 = vmatprep.subr.mxu0 0.0
    %935 = vmatpush1.msra.mxu0 0.0
    %936 = vmatprep.subr.mxu0 0.0
    %937 = vmatpush1.msra.mxu0 0.0
    %938 = vmatprep.subr.mxu0 0.0
    %939 = vmatpush1.msra.mxu0 0.0
    %940 = vmatprep.subr.mxu0 0.0
    %941 = vmatpush1.msra.mxu0 0.0
    %942 = vmatprep.subr.mxu0 0.0
    %943 = vmatpush1.msra.mxu0 0.0
    %944 = vmatprep.subr.mxu0 0.0
    %945 = vmatpush1.msra.mxu0 0.0
    %946 = vmatprep.subr.mxu0 0.0
    %947 = vmatpush1.msra.mxu0 0.0
    %948 = vmatprep.subr.mxu0 0.0
    %949 = vmatpush1.msra.mxu0 0.0
    %950 = vmatprep.subr.mxu0 0.0
    %951 = vmatpush1.msra.mxu0 0.0
    %952 = vmatprep.subr.mxu0 0.0
    %953 = vmatpush1.msra.mxu0 0.0
    %954 = vmatprep.subr.mxu0 0.0
    %955 = vmatpush1.msra.mxu0 0.0
    %956 = vmatprep.subr.mxu0 0.0
    %957 = vmatpush1.msra.mxu0 0.0
    %958 = vmatprep.subr.mxu0 0.0
    %959 = vmatpush1.msra.mxu0 0.0
    %960 = vmatprep.subr.mxu0 0.0
    %961 = vmatpush1.msra.mxu0 0.0
    %962 = vmatprep.subr.mxu0 0.0
    %963 = vmatpush1.msra.mxu0 0.0
    %964 = vmatprep.subr.mxu0 0.0
    %965 = vmatpush1.msra.mxu0 0.0
    %966 = vmatprep.subr.mxu0 0.0
    %967 = vmatpush1.msra.mxu0 0.0
    %968 = vmatprep.mubr.f32.mxu0 0.0
    %969 = vmatmul.mubr.f32.gmra.mrb[0].mxu0 %v902
    %v970 = vpop.f32.mrb[0].mxu0
    %v971 = vadd.f32 0.0, %v970
    %v972 = vpop.f32.mrb[0].mxu0
    %973 = vdwg.mxu0
    %975 = vrot.lane.b32.xlu0 %v397, 104
    %v976 = vpop.permute.xlu0 %975
    %v979 = vsel %vm553, %v750, 0
    %981 = vmatprep.subr.mxu0 0.0
    %982 = vmatpush1.msra.mxu0 %v976
    %983 = vmatprep.subr.mxu0 0.0
    %984 = vmatpush1.msra.mxu0 0.0
    %985 = vmatprep.subr.mxu0 0.0
    %986 = vmatpush1.msra.mxu0 0.0
    %987 = vmatprep.subr.mxu0 0.0
    %988 = vmatpush1.msra.mxu0 0.0
    %989 = vmatprep.subr.mxu0 0.0
    %990 = vmatpush1.msra.mxu0 0.0
    %991 = vmatprep.subr.mxu0 0.0
    %992 = vmatpush1.msra.mxu0 0.0
    %993 = vmatprep.subr.mxu0 0.0
    %994 = vmatpush1.msra.mxu0 0.0
    %995 = vmatprep.subr.mxu0 0.0
    %996 = vmatpush1.msra.mxu0 0.0
    %997 = vmatprep.subr.mxu0 0.0
    %998 = vmatpush1.msra.mxu0 0.0
    %999 = vmatprep.subr.mxu0 0.0
    %1000 = vmatpush1.msra.mxu0 0.0
    %1001 = vmatprep.subr.mxu0 0.0
    %1002 = vmatpush1.msra.mxu0 0.0
    %1003 = vmatprep.subr.mxu0 0.0
    %1004 = vmatpush1.msra.mxu0 0.0
    %1005 = vmatprep.subr.mxu0 0.0
    %1006 = vmatpush1.msra.mxu0 0.0
    %1007 = vmatprep.subr.mxu0 0.0
    %1008 = vmatpush1.msra.mxu0 0.0
    %1009 = vmatprep.subr.mxu0 0.0
    %1010 = vmatpush1.msra.mxu0 0.0
    %1011 = vmatprep.subr.mxu0 0.0
    %1012 = vmatpush1.msra.mxu0 0.0
    %1013 = vmatprep.subr.mxu0 0.0
    %1014 = vmatpush1.msra.mxu0 0.0
    %1015 = vmatprep.subr.mxu0 0.0
    %1016 = vmatpush1.msra.mxu0 0.0
    %1017 = vmatprep.subr.mxu0 0.0
    %1018 = vmatpush1.msra.mxu0 0.0
    %1019 = vmatprep.subr.mxu0 0.0
    %1020 = vmatpush1.msra.mxu0 0.0
    %1021 = vmatprep.subr.mxu0 0.0
    %1022 = vmatpush1.msra.mxu0 0.0
    %1023 = vmatprep.subr.mxu0 0.0
    %1024 = vmatpush1.msra.mxu0 0.0
    %1025 = vmatprep.subr.mxu0 0.0
    %1026 = vmatpush1.msra.mxu0 0.0
    %1027 = vmatprep.subr.mxu0 0.0
    %1028 = vmatpush1.msra.mxu0 0.0
    %1029 = vmatprep.subr.mxu0 0.0
    %1030 = vmatpush1.msra.mxu0 0.0
    %1031 = vmatprep.subr.mxu0 0.0
    %1032 = vmatpush1.msra.mxu0 0.0
    %1033 = vmatprep.subr.mxu0 0.0
    %1034 = vmatpush1.msra.mxu0 0.0
    %1035 = vmatprep.subr.mxu0 0.0
    %1036 = vmatpush1.msra.mxu0 0.0
    %1037 = vmatprep.subr.mxu0 0.0
    %1038 = vmatpush1.msra.mxu0 0.0
    %1039 = vmatprep.subr.mxu0 0.0
    %1040 = vmatpush1.msra.mxu0 0.0
    %1041 = vmatprep.subr.mxu0 0.0
    %1042 = vmatpush1.msra.mxu0 0.0
    %1043 = vmatprep.subr.mxu0 0.0
    %1044 = vmatpush1.msra.mxu0 0.0
    %1045 = vmatprep.mubr.f32.mxu0 0.0
    %1046 = vmatmul.mubr.f32.gmra.mrb[0].mxu0 %v979
    %v1047 = vpop.f32.mrb[0].mxu0
    %v1048 = vadd.f32 0.0, %v1047
    %v1049 = vpop.f32.mrb[0].mxu0
    %1050 = vdwg.mxu0
    %1053 = vrot.lane.b32.xlu0 %v971, 24
    %v1054 = vpop.permute.xlu0 %1053
    %1055 = vrot.lane.b32.xlu0 %v1048, 24
    %v1056 = vpop.permute.xlu0 %1055
    %v1059 = vsel %vm224, %v821, %v1054
    %v1060 = vsel %vm224, %v894, %v1056
    %vm1061 = vcmask 392192
    %1062 = vst.msk [vmem:[#allocation14] sm:$0xff] %vm1061, %v1059
    %1063 = vst.msk [vmem:[#allocation14 + $0x8] sm:$0xff] %vm1061, %v1060
    // Predicated region
    $region62: #{tpu_custom_call.1} parent=1 // pred_check
      _
    $region63: #{tpu_custom_call.1} parent=1 // pred_check_branch
      %1065 = sbr.rel (0) target = $region65
    $region64: #{tpu_custom_call.1} parent=1 // pred_region
      %s1067 = ssub.s32 256, 256
      %1068 = vsyncadd [#allocation5], %s1067
      %s1069 = sshll.u32 [#allocation14], 4
      %s1070 = int_to_ptr.vmem [resolvable:$true] %s1069
      %1075 = dma.vmem_to_hbm [thread:$0]  %s1070, 256, %s9, [#allocation5], 128, 128, 8
    $region65: #{tpu_custom_call.1} parent=1 // pred_fallthru
      _
    // Predicated region
    $region66: #{tpu_custom_call.1} parent=1 // pred_check
      _
    $region67: #{tpu_custom_call.1} parent=1 // pred_check_branch
      %1077 = sbr.rel (0) target = $region69
    $region68: #{tpu_custom_call.1} parent=1 // pred_region
      %1078 = dma.done [#allocation5], 256
    $region69: #{tpu_custom_call.1} parent=1 // pred_fallthru
      _
    %1079 = vsyncpa [#allocation4], 1
    %1080 = vsyncpa [#allocation7], 1
    %1081 = vsyncpa [#allocation10], 1
    %1082 = vsyncpa [#allocation13], 1
    %1083 = vsyncpa [#allocation5], 1

</llo_original>
